<compile_context>
chip_gen: v7x
topology: tpu7x:2x2x1
jax: 0.10.0
libtpu: 0.0.40
codegen_flags: <defaults>
</compile_context>

<pallas_src>
import functools

import jax
import jax.numpy as jnp
from jax.experimental import pallas as pl
from jax.experimental.pallas import tpu as pltpu


def _rmsnorm_kernel(x_ref, gain_ref, o_ref, *, eps: float):
    # NOTE(correctness): the last grid block may be partial.  Rows beyond the
    # valid range hold garbage and can produce inf/NaN through x*x / rsqrt, but
    # the reduction is strictly per-row and Pallas only writes back the valid
    # rows, so results are unaffected.  Do not add any cross-row reduction here.
    x = x_ref[...].astype(jnp.float32)                    # (tile_rows, d_model)
    ms = jnp.mean(x * x, axis=-1, keepdims=True)          # (tile_rows, 1)
    inv_rms = jax.lax.rsqrt(ms + eps)                     # narrow column; EUP
    g = gain_ref[...].astype(jnp.float32)                 # (1, d_model)
    # (tile_rows, 1) broadcasts lane-wise; inv_rms never materialized full-width.
    o_ref[...] = (g * (x * inv_rms)).astype(o_ref.dtype)


def _device_kind() -> str:
    try:
        return jax.devices()[0].device_kind.lower()
    except Exception:
        return ""


def _is_v7x(kind: str) -> bool:
    return ("v7" in kind) or ("7x" in kind)


def _vmem_limit_bytes(kind: str, vmem_cap_bytes=None) -> int:
    """Chip-aware scoped-VMEM budget: ~75% of physical, capped at 100 MiB."""
    cap = vmem_cap_bytes
    if cap is None:
        try:
            cap = int(pltpu.get_tpu_info().vmem_capacity_bytes)
        except Exception:
            cap = None
    if cap is None:
        # device_kind-based fallback so AOT / off-device tracing does not
        # silently shrink tiles on 128 MiB-VMEM chips (v5e/v6e).
        cap = (64 << 20) if _is_v7x(kind) else (128 << 20)
    return min(cap * 3 // 4, 100 << 20)


def _tile_divisor(itemsize: int, input_buffers: int) -> int:
    """Tile-equivalents of VMEM live at once, dtype- and buffer-aware."""
    # input_buffers x input + 2 x output at `itemsize`, plus ~3 live full-width
    # f32 temps (upcast x, x*x, pre-downcast product) at 4 bytes/elem.
    return (input_buffers + 2) + 3 * max(4 // max(itemsize, 1), 1)


def _pick_tile_rows(rows: int, d_model: int, itemsize: int, vmem_limit: int,
                    *, min_blocks: int, input_buffers: int) -> int:
    """Pick a large, VMEM-safe, sublane-clean row tile (byte-capped)."""
    row_bytes = max(d_model * itemsize, 1)
    divisor = _tile_divisor(itemsize, input_buffers)
    # Byte-based cap: streaming kernels only approach the HBM roofline at
    # multi-MiB tiles; beyond ~8 MiB there is nothing left to gain.
    target_tile_bytes = min(max(vmem_limit // divisor, 1 << 20), 8 << 20)
    tile_rows = max(target_tile_bytes // row_bytes, 16)
    # Keep at least `min_blocks` grid steps: 8 to feed v7x's two TensorCores,
    # ~3 on single-TC v5e/v6e just to keep the double/triple buffer busy.
    tile_rows = min(tile_rows, max(16, rows // min_blocks))
    # Multiple of 16 sublanes: full bf16 vregs (and divisible by 8 for f32).
    tile_rows = max(16, (tile_rows // 16) * 16)
    # Never larger than the rounded-up row count.
    tile_rows = min(tile_rows, max(16, ((rows + 15) // 16) * 16))
    return int(tile_rows)


def rmsnorm(x: jax.Array, gain: jax.Array, eps: float = 1e-5, *,
            vmem_cap_bytes: int | None = None) -> jax.Array:
    """RMSNorm over the last dim of x, scaled by `gain` (shape (d_model,))."""
    in_dtype = x.dtype
    d_model = x.shape[-1]
    lead_shape = x.shape[:-1]
    rows = 1
    for s in lead_shape:
        rows *= s

    # XLA fallback for lane-sparse / badly-ragged feature dims:
    #  - d_model < 128: masked partial stores + per-call overhead dominate.
    #  - 128 < d_model < 256 and not a multiple of 128: the masked lane tail is
    #    a large fraction of every row.  Large ragged d_model stays in Pallas.
    if d_model < 128 or (d_model % 128 != 0 and d_model < 256):
        xf = x.astype(jnp.float32)
        inv = jax.lax.rsqrt(jnp.mean(xf * xf, axis=-1, keepdims=True) + eps)
        return (gain.astype(jnp.float32) * (xf * inv)).astype(in_dtype)

    x2d = x.reshape(rows, d_model)
    gain2d = gain.reshape(1, d_model)

    kind = _device_kind()
    v7x = _is_v7x(kind)
    vmem_limit = _vmem_limit_bytes(kind, vmem_cap_bytes)
    itemsize = jnp.dtype(in_dtype).itemsize

    # Deeper input prefetch only on 1-TC / 128 MiB-VMEM chips (v5e/v6e); v7x's
    # 48 MiB scoped budget + f32 temps leaves no headroom for a 3rd buffer.
    want_input_buffers = 2 if v7x else 3
    min_blocks = 8 if v7x else 3
    tile_rows = _pick_tile_rows(rows, d_model, itemsize, vmem_limit,
                                min_blocks=min_blocks,
                                input_buffers=want_input_buffers)
    num_blocks = pl.cdiv(rows, tile_rows)
    grid = (num_blocks,)
    input_buffers = want_input_buffers if num_blocks >= want_input_buffers else 2

    # v7x: "parallel" alone is not guaranteed to shard the grid across both
    # TensorCores; request core-parallel sharding of the row axis explicitly.
    semantics = (pltpu.CORE_PARALLEL,) if (v7x and num_blocks >= 2) else ("parallel",)

    def _call(dim_semantics, in_bufs):
        x_spec_kwargs = {}
        if in_bufs != 2:
            x_spec_kwargs["pipeline_mode"] = pl.Buffered(in_bufs)
        return pl.pallas_call(
            functools.partial(_rmsnorm_kernel, eps=eps),
            out_shape=jax.ShapeDtypeStruct((rows, d_model), in_dtype),
            grid_spec=pltpu.PrefetchScalarGridSpec(
                num_scalar_prefetch=0,
                grid=grid,  # partial last block handled by Pallas (no pad/slice)
                in_specs=[
                    pl.BlockSpec((tile_rows, d_model), lambda i: (i, 0),
                                 **x_spec_kwargs),
                    # Constant block index -> gain fetched once, not per step.
                    pl.BlockSpec((1, d_model), lambda i: (0, 0)),
                ],
                out_specs=pl.BlockSpec((tile_rows, d_model), lambda i: (i, 0)),
            ),
            compiler_params=pltpu.CompilerParams(
                dimension_semantics=dim_semantics,
                vmem_limit_bytes=vmem_limit),
        )(x2d, gain2d)

    try:
        out = _call(semantics, input_buffers)
    except Exception:
        # Fall back to the previously-proven conservative configuration
        # (default 2-deep buffering, "parallel" semantics).
        out = _call(("parallel",), 2)

    return out.reshape(*lead_shape, d_model)


if __name__ == "__main__":
    key = jax.random.PRNGKey(0)
    kx, kx2, kg2, kx3, kg3 = jax.random.split(key, 5)

    def ref_rmsnorm(x, gain, eps=1e-5):
        xf = x.astype(jnp.float32)
        rms = jnp.sqrt(jnp.mean(xf * xf, axis=-1, keepdims=True) + eps)
        return (gain.astype(jnp.float32) * (xf / rms)).astype(x.dtype)

    # Small shape consistent with the module; d_model kept lane-dense (128).
    batch, seq, d_model = 2, 8, 128
    x = jax.random.normal(kx, (batch, seq, d_model), dtype=jnp.bfloat16)
    gain = jnp.ones((d_model,), dtype=jnp.float32)  # module init: ones(d_model)

    out = jax.block_until_ready(rmsnorm(x, gain, eps=1e-5))
    ref = ref_rmsnorm(x, gain)
    assert out.shape == x.shape and out.dtype == x.dtype
    assert jnp.allclose(out.astype(jnp.float32), ref.astype(jnp.float32),
                        atol=1e-2, rtol=1e-2)

    # Rows not a multiple of the tile (exercises Pallas partial blocks, no
    # host-side pad/slice) and a non-trivial gain, f32 input.
    x2 = jax.random.normal(kx2, (3, 37, d_model), dtype=jnp.float32)
    gain2 = jax.random.normal(kg2, (d_model,), dtype=jnp.float32)
    out2 = jax.block_until_ready(rmsnorm(x2, gain2, eps=1e-5))
    ref2 = ref_rmsnorm(x2, gain2)
    assert jnp.allclose(out2, ref2, atol=1e-4, rtol=1e-4)

    # Ragged small feature dim (128 < d_model < 256, not a multiple of 128):
    # exercises the gated XLA fallback path.
    x3 = jax.random.normal(kx3, (4, 5, 192), dtype=jnp.float32)
    gain3 = jax.random.normal(kg3, (192,), dtype=jnp.float32)
    out3 = jax.block_until_ready(rmsnorm(x3, gain3, eps=1e-5))
    ref3 = ref_rmsnorm(x3, gain3)
    assert jnp.allclose(out3, ref3, atol=1e-4, rtol=1e-4)

    print("KERNEL_OK")
</pallas_src>

<mosaic_0001>
module attributes {stable_mosaic.version = 11 : i64} {
  func.func @_rmsnorm_kernel(%arg0: i32, %arg1: memref<16x128xbf16, #tpu.memory_space<vmem>>, %arg2: memref<1x128xf32, #tpu.memory_space<vmem>>, %arg3: memref<16x128xbf16, #tpu.memory_space<vmem>>) attributes {dimension_semantics = [#tpu.dimension_semantics<parallel>], iteration_bounds = array<i64: 1>, scalar_prefetch = 0 : i64, scratch_operands = 0 : i64, tpu.core_type = #tpu.core_type<tc>, window_params = [{transform_indices = @transform_0, window_bounds = array<i64: 16, 128>}, {pipeline_mode = #tpu.pipeline_mode<synchronous>, transform_indices = @transform_1, window_bounds = array<i64: 1, 128>}, {transform_indices = @transform_2, window_bounds = array<i64: 16, 128>}]} {
    %c0 = arith.constant 0 : index
    %c0_0 = arith.constant 0 : index
    %0 = vector.load %arg1[%c0, %c0_0] : memref<16x128xbf16, #tpu.memory_space<vmem>>, vector<16x128xbf16>
    %1 = arith.extf %0 : vector<16x128xbf16> to vector<16x128xf32>
    %2 = arith.mulf %1, %1 : vector<16x128xf32>
    %cst = arith.constant dense<0.000000e+00> : vector<16xf32>
    %3 = vector.multi_reduction <add>, %2, %cst [1] : vector<16x128xf32> to vector<16xf32>
    %4 = vector.shape_cast %3 : vector<16xf32> to vector<16x1xf32>
    %cst_1 = arith.constant 1.280000e+02 : f32
    %5 = vector.broadcast %cst_1 : f32 to vector<16x1xf32>
    %6 = arith.divf %4, %5 : vector<16x1xf32>
    %cst_2 = arith.constant 9.99999974E-6 : f32
    %7 = vector.broadcast %cst_2 : f32 to vector<16x1xf32>
    %8 = arith.addf %6, %7 : vector<16x1xf32>
    %9 = math.rsqrt %8 : vector<16x1xf32>
    %c0_3 = arith.constant 0 : index
    %c0_4 = arith.constant 0 : index
    %10 = vector.load %arg2[%c0_3, %c0_4] : memref<1x128xf32, #tpu.memory_space<vmem>>, vector<1x128xf32>
    %11 = vector.broadcast %9 : vector<16x1xf32> to vector<16x128xf32>
    %12 = arith.mulf %1, %11 : vector<16x128xf32>
    %13 = vector.broadcast %10 : vector<1x128xf32> to vector<16x128xf32>
    %14 = arith.mulf %13, %12 : vector<16x128xf32>
    %15 = arith.truncf %14 : vector<16x128xf32> to vector<16x128xbf16>
    %c0_5 = arith.constant 0 : index
    %c0_6 = arith.constant 0 : index
    %16 = vector.load %arg3[%c0_5, %c0_6] : memref<16x128xbf16, #tpu.memory_space<vmem>>, vector<16x128xbf16>
    tpu.vector_store %arg3[%c0_5, %c0_6], %15 {strides = array<i32>} : memref<16x128xbf16, #tpu.memory_space<vmem>>, vector<16x128xbf16>,
    return
  }
  func.func @transform_0(%arg0: i32) -> (i32, i32) {
    %c0_i32 = arith.constant 0 : i32
    %c0_i32_0 = arith.constant 0 : i32
    return %arg0, %c0_i32 : i32, i32
  }
  func.func @transform_1(%arg0: i32) -> (i32, i32) {
    %c0_i32 = arith.constant 0 : i32
    %c0_i32_0 = arith.constant 0 : i32
    %c0_i32_1 = arith.constant 0 : i32
    return %c0_i32, %c0_i32_0 : i32, i32
  }
  func.func @transform_2(%arg0: i32) -> (i32, i32) {
    %c0_i32 = arith.constant 0 : i32
    %c0_i32_0 = arith.constant 0 : i32
    return %arg0, %c0_i32 : i32, i32
  }
}

module attributes {stable_mosaic.version = 11 : i64} {
  func.func @_rmsnorm_kernel(%arg0: i32, %arg1: memref<16x128xbf16, #tpu.memory_space<vmem>>, %arg2: memref<1x128xf32, #tpu.memory_space<vmem>>, %arg3: memref<16x128xbf16, #tpu.memory_space<vmem>>) attributes {dimension_semantics = [#tpu.dimension_semantics<parallel>], iteration_bounds = array<i64: 1>, scalar_prefetch = 0 : i64, scratch_operands = 0 : i64, tpu.core_type = #tpu.core_type<tc>, window_params = [{transform_indices = @transform_0, window_bounds = array<i64: 16, 128>}, {pipeline_mode = #tpu.pipeline_mode<synchronous>, transform_indices = @transform_1, window_bounds = array<i64: 1, 128>}, {transform_indices = @transform_2, window_bounds = array<i64: 16, 128>}]} {
    %c0 = arith.constant 0 : index
    %c0_0 = arith.constant 0 : index
    %0 = vector.load %arg1[%c0, %c0_0] : memref<16x128xbf16, #tpu.memory_space<vmem>>, vector<16x128xbf16>
    %1 = arith.extf %0 : vector<16x128xbf16> to vector<16x128xf32>
    %2 = arith.mulf %1, %1 : vector<16x128xf32>
    %cst = arith.constant dense<0.000000e+00> : vector<16xf32>
    %3 = vector.multi_reduction <add>, %2, %cst [1] : vector<16x128xf32> to vector<16xf32>
    %4 = vector.shape_cast %3 : vector<16xf32> to vector<16x1xf32>
    %cst_1 = arith.constant 1.280000e+02 : f32
    %5 = vector.broadcast %cst_1 : f32 to vector<16x1xf32>
    %6 = arith.divf %4, %5 : vector<16x1xf32>
    %cst_2 = arith.constant 9.99999974E-6 : f32
    %7 = vector.broadcast %cst_2 : f32 to vector<16x1xf32>
    %8 = arith.addf %6, %7 : vector<16x1xf32>
    %9 = math.rsqrt %8 : vector<16x1xf32>
    %c0_3 = arith.constant 0 : index
    %c0_4 = arith.constant 0 : index
    %10 = vector.load %arg2[%c0_3, %c0_4] : memref<1x128xf32, #tpu.memory_space<vmem>>, vector<1x128xf32>
    %11 = vector.broadcast %9 : vector<16x1xf32> to vector<16x128xf32>
    %12 = arith.mulf %1, %11 : vector<16x128xf32>
    %13 = vector.broadcast %10 : vector<1x128xf32> to vector<16x128xf32>
    %14 = arith.mulf %13, %12 : vector<16x128xf32>
    %15 = arith.truncf %14 : vector<16x128xf32> to vector<16x128xbf16>
    %c0_5 = arith.constant 0 : index
    %c0_6 = arith.constant 0 : index
    %16 = vector.load %arg3[%c0_5, %c0_6] : memref<16x128xbf16, #tpu.memory_space<vmem>>, vector<16x128xbf16>
    tpu.vector_store %arg3[%c0_5, %c0_6], %15 {strides = array<i32>} : memref<16x128xbf16, #tpu.memory_space<vmem>>, vector<16x128xbf16>,
    return
  }
  func.func @transform_0(%arg0: i32) -> (i32, i32) {
    %c0_i32 = arith.constant 0 : i32
    %c0_i32_0 = arith.constant 0 : i32
    return %arg0, %c0_i32 : i32, i32
  }
  func.func @transform_1(%arg0: i32) -> (i32, i32) {
    %c0_i32 = arith.constant 0 : i32
    %c0_i32_0 = arith.constant 0 : i32
    %c0_i32_1 = arith.constant 0 : i32
    return %c0_i32, %c0_i32_0 : i32, i32
  }
  func.func @transform_2(%arg0: i32) -> (i32, i32) {
    %c0_i32 = arith.constant 0 : i32
    %c0_i32_0 = arith.constant 0 : i32
    return %arg0, %c0_i32 : i32, i32
  }
}

</mosaic_0001>

<llo_original>
// kernel: tpu_custom_call.1
$region0: #{tpu_custom_call.1}
  #allocation0 [shape = 'u32[]', space=smem, size = 0x4, offset = 0x4, fixed_abs, tag = 'smem constant byte address 0x4 - core index']
  #allocation1 [shape = 'u32[144,128]{1,0:T(1,128)}', space=vmem, size = 0x12000, scoped, tag = 'internal scratch']
  %s0 = inlined_call_operand.hbm [shape: bf16[16,128], index: 0, kind: input, shape index: {}]
  %s1 = inlined_call_operand.hbm [shape: f32[1,128], index: 1, kind: input, shape index: {}]
  %s2 = inlined_call_operand.hbm [shape: bf16[16,128], index: 2, kind: output, shape index: {}]
  %s3 = sld [smem:[#allocation0]]
  $region26: #{tpu_custom_call.1} parent=0
    _
  %s5 = ssub.s32 1, %s3
  %s6 = scalar_select 0, %s5, %s3
  $region1: #{tpu_custom_call.1} parent=0
    #allocation2 [shape = 'u8[4096]{0}', space=vmem, size = 0x1000, scoped, tag = 'input window, operand 0, single buffered']
    #allocation3 [shape = 's32[1]{0}', space=sflag, size = 0x4, scoped, tag = 'scoped memory for tpu_custom_call.1']
    #allocation4 [shape = 's32[1]{0}', space=sflag, size = 0x4, scoped, tag = 'scoped memory for tpu_custom_call.1']
    #allocation5 [shape = 'u8[512]{0}', space=vmem, size = 0x400, scoped, tag = 'input window, operand 1, single buffered']
    #allocation6 [shape = 's32[1]{0}', space=sflag, size = 0x4, scoped, tag = 'scoped memory for tpu_custom_call.1']
    #allocation7 [shape = 'u8[4096]{0}', space=vmem, size = 0x1000, scoped, tag = 'output window, operand 0, single buffered']
    %7 = vsyncpa [#allocation3], 0
    %8 = vsyncpa [#allocation6], 0
    %9 = vsyncpa [#allocation4], 0
    // Predicated region
    $region2: #{tpu_custom_call.1} parent=1 // pred_check
      _
    $region3: #{tpu_custom_call.1} parent=1 // pred_check_branch
      %11 = sbr.rel (0) target = $region5
    $region4: #{tpu_custom_call.1} parent=1 // pred_region
      %s13 = ssub.s32 128, 128
      %14 = vsyncadd [#allocation3], %s13
      %s15 = sshll.u32 [#allocation2], 4
      %s16 = int_to_ptr.vmem [resolvable:$true] %s15
      %21 = dma.hbm_to_vmem [thread:$0]  %s0, 128, %s16, [#allocation3], 64, 64, 4
    $region5: #{tpu_custom_call.1} parent=1 // pred_fallthru
      _
    // Predicated region
    $region6: #{tpu_custom_call.1} parent=1 // pred_check
      _
    $region7: #{tpu_custom_call.1} parent=1 // pred_check_branch
      %23 = sbr.rel (0) target = $region9
    $region8: #{tpu_custom_call.1} parent=1 // pred_region
      %s25 = ssub.s32 16, 16
      %26 = vsyncadd [#allocation6], %s25
      %s28 = sshll.u32 [#allocation5], 4
      %s29 = int_to_ptr.vmem [resolvable:$true] %s28
      %31 = dma.hbm_to_vmem [thread:$0]  %s1, 16, %s29, [#allocation6]
    $region9: #{tpu_custom_call.1} parent=1 // pred_fallthru
      _
    // Predicated region
    $region10: #{tpu_custom_call.1} parent=1 // pred_check
      _
    $region11: #{tpu_custom_call.1} parent=1 // pred_check_branch
      %33 = sbr.rel (0) target = $region13
    $region12: #{tpu_custom_call.1} parent=1 // pred_region
      %34 = dma.done [#allocation3], 128
    $region13: #{tpu_custom_call.1} parent=1 // pred_fallthru
      _
    // Predicated region
    $region14: #{tpu_custom_call.1} parent=1 // pred_check
      _
    $region15: #{tpu_custom_call.1} parent=1 // pred_check_branch
      %36 = sbr.rel (0) target = $region17
    $region16: #{tpu_custom_call.1} parent=1 // pred_region
      %37 = dma.done [#allocation6], 16
    $region17: #{tpu_custom_call.1} parent=1 // pred_fallthru
      _
    %v38 = vld [vmem:[#allocation2] sm:$0xf]
    %v39 = vld [vmem:[#allocation2 + $0x4] sm:$0xf]
    %v40 = vunpack.c.l.bf16 %v38
    %v41 = vunpack.c.l.bf16 %v39
    %v42 = vmul.f32 %v40, %v40
    %v43 = vmul.f32 %v41, %v41
    %44 = vadd.xlane.f32.xlu0 %v42
    %v45 = vpop.xlane.xlu0 %44
    %46 = vadd.xlane.f32.xlu0 %v43
    %v47 = vpop.xlane.xlu0 %46
    %v48 = vrcp.pop 128.0
    %v49 = vmul.f32 %v45, %v48
    %v50 = vmul.f32 %v47, %v48
    %v51 = vadd.f32 %v49, 1e-05
    %v52 = vadd.f32 %v50, 1e-05
    %v53 = vrsqrt.pop %v51
    %v54 = vrsqrt.pop %v52
    %v55 = vld [vmem:[#allocation5] sm:$0x1]
    %v56 = vmul.f32 %v40, %v53
    %v57 = vmul.f32 %v41, %v54
    %v59 = vlaneseq
    %v60 = vshrl.u32 %v59, 7
    %v61 = vsub.s32 0, %v60
    %v62 = vrot.slane %v55, %v61
    %v64 = vmul.f32 %v62, %v56
    %v65 = vmul.f32 %v62, %v57
    %v66 = vpack.c.bf16 %v65, %v64
    %v68 = vunpack.c.l.b16 %v66
    %v69 = vunpack.c.h.b16 %v66
    %v70 = vpack.c.b16 %v68, %v68
    %v71 = vpack.c.b16 %v69, %v69
    %74 = vst [vmem:[#allocation7] sm:$0xf] %v70
    %75 = vst [vmem:[#allocation7 + $0x4] sm:$0xf] %v71
    // Predicated region
    $region18: #{tpu_custom_call.1} parent=1 // pred_check
      _
    $region19: #{tpu_custom_call.1} parent=1 // pred_check_branch
      %77 = sbr.rel (0) target = $region21
    $region20: #{tpu_custom_call.1} parent=1 // pred_region
      %s79 = ssub.s32 128, 128
      %80 = vsyncadd [#allocation4], %s79
      %s81 = sshll.u32 [#allocation7], 4
      %s82 = int_to_ptr.vmem [resolvable:$true] %s81
      %87 = dma.vmem_to_hbm [thread:$0]  %s82, 128, %s2, [#allocation4], 64, 64, 4
    $region21: #{tpu_custom_call.1} parent=1 // pred_fallthru
      _
    // Predicated region
    $region22: #{tpu_custom_call.1} parent=1 // pred_check
      _
    $region23: #{tpu_custom_call.1} parent=1 // pred_check_branch
      %89 = sbr.rel (0) target = $region25
    $region24: #{tpu_custom_call.1} parent=1 // pred_region
      %90 = dma.done [#allocation4], 128
    $region25: #{tpu_custom_call.1} parent=1 // pred_fallthru
      _
    %91 = vsyncpa [#allocation3], 1
    %92 = vsyncpa [#allocation6], 1
    %93 = vsyncpa [#allocation4], 1

// kernel: tpu_custom_call.1
$region0: #{tpu_custom_call.1}
  #allocation0 [shape = 'u32[]', space=smem, size = 0x4, offset = 0x4, fixed_abs, tag = 'smem constant byte address 0x4 - core index']
  #allocation1 [shape = 'u32[144,128]{1,0:T(1,128)}', space=vmem, size = 0x12000, scoped, tag = 'internal scratch']
  %s0 = inlined_call_operand.hbm [shape: bf16[16,128], index: 0, kind: input, shape index: {}]
  %s1 = inlined_call_operand.hbm [shape: f32[1,128], index: 1, kind: input, shape index: {}]
  %s2 = inlined_call_operand.hbm [shape: bf16[16,128], index: 2, kind: output, shape index: {}]
  %s3 = sld [smem:[#allocation0]]
  $region26: #{tpu_custom_call.1} parent=0
    _
  %s5 = ssub.s32 1, %s3
  %s6 = scalar_select 0, %s5, %s3
  $region1: #{tpu_custom_call.1} parent=0
    #allocation2 [shape = 'u8[4096]{0}', space=vmem, size = 0x1000, scoped, tag = 'input window, operand 0, single buffered']
    #allocation3 [shape = 's32[1]{0}', space=sflag, size = 0x4, scoped, tag = 'scoped memory for tpu_custom_call.1']
    #allocation4 [shape = 's32[1]{0}', space=sflag, size = 0x4, scoped, tag = 'scoped memory for tpu_custom_call.1']
    #allocation5 [shape = 'u8[512]{0}', space=vmem, size = 0x400, scoped, tag = 'input window, operand 1, single buffered']
    #allocation6 [shape = 's32[1]{0}', space=sflag, size = 0x4, scoped, tag = 'scoped memory for tpu_custom_call.1']
    #allocation7 [shape = 'u8[4096]{0}', space=vmem, size = 0x1000, scoped, tag = 'output window, operand 0, single buffered']
    %7 = vsyncpa [#allocation3], 0
    %8 = vsyncpa [#allocation6], 0
    %9 = vsyncpa [#allocation4], 0
    // Predicated region
    $region2: #{tpu_custom_call.1} parent=1 // pred_check
      _
    $region3: #{tpu_custom_call.1} parent=1 // pred_check_branch
      %11 = sbr.rel (0) target = $region5
    $region4: #{tpu_custom_call.1} parent=1 // pred_region
      %s13 = ssub.s32 128, 128
      %14 = vsyncadd [#allocation3], %s13
      %s15 = sshll.u32 [#allocation2], 4
      %s16 = int_to_ptr.vmem [resolvable:$true] %s15
      %21 = dma.hbm_to_vmem [thread:$0]  %s0, 128, %s16, [#allocation3], 64, 64, 4
    $region5: #{tpu_custom_call.1} parent=1 // pred_fallthru
      _
    // Predicated region
    $region6: #{tpu_custom_call.1} parent=1 // pred_check
      _
    $region7: #{tpu_custom_call.1} parent=1 // pred_check_branch
      %23 = sbr.rel (0) target = $region9
    $region8: #{tpu_custom_call.1} parent=1 // pred_region
      %s25 = ssub.s32 16, 16
      %26 = vsyncadd [#allocation6], %s25
      %s28 = sshll.u32 [#allocation5], 4
      %s29 = int_to_ptr.vmem [resolvable:$true] %s28
      %31 = dma.hbm_to_vmem [thread:$0]  %s1, 16, %s29, [#allocation6]
    $region9: #{tpu_custom_call.1} parent=1 // pred_fallthru
      _
    // Predicated region
    $region10: #{tpu_custom_call.1} parent=1 // pred_check
      _
    $region11: #{tpu_custom_call.1} parent=1 // pred_check_branch
      %33 = sbr.rel (0) target = $region13
    $region12: #{tpu_custom_call.1} parent=1 // pred_region
      %34 = dma.done [#allocation3], 128
    $region13: #{tpu_custom_call.1} parent=1 // pred_fallthru
      _
    // Predicated region
    $region14: #{tpu_custom_call.1} parent=1 // pred_check
      _
    $region15: #{tpu_custom_call.1} parent=1 // pred_check_branch
      %36 = sbr.rel (0) target = $region17
    $region16: #{tpu_custom_call.1} parent=1 // pred_region
      %37 = dma.done [#allocation6], 16
    $region17: #{tpu_custom_call.1} parent=1 // pred_fallthru
      _
    %v38 = vld [vmem:[#allocation2] sm:$0xf]
    %v39 = vld [vmem:[#allocation2 + $0x4] sm:$0xf]
    %v40 = vunpack.c.l.bf16 %v38
    %v41 = vunpack.c.l.bf16 %v39
    %v42 = vmul.f32 %v40, %v40
    %v43 = vmul.f32 %v41, %v41
    %44 = vadd.xlane.f32.xlu0 %v42
    %v45 = vpop.xlane.xlu0 %44
    %46 = vadd.xlane.f32.xlu0 %v43
    %v47 = vpop.xlane.xlu0 %46
    %v48 = vrcp.pop 128.0
    %v49 = vmul.f32 %v45, %v48
    %v50 = vmul.f32 %v47, %v48
    %v51 = vadd.f32 %v49, 1e-05
    %v52 = vadd.f32 %v50, 1e-05
    %v53 = vrsqrt.pop %v51
    %v54 = vrsqrt.pop %v52
    %v55 = vld [vmem:[#allocation5] sm:$0x1]
    %v56 = vmul.f32 %v40, %v53
    %v57 = vmul.f32 %v41, %v54
    %v59 = vlaneseq
    %v60 = vshrl.u32 %v59, 7
    %v61 = vsub.s32 0, %v60
    %v62 = vrot.slane %v55, %v61
    %v64 = vmul.f32 %v62, %v56
    %v65 = vmul.f32 %v62, %v57
    %v66 = vpack.c.bf16 %v65, %v64
    %v68 = vunpack.c.l.b16 %v66
    %v69 = vunpack.c.h.b16 %v66
    %v70 = vpack.c.b16 %v68, %v68
    %v71 = vpack.c.b16 %v69, %v69
    %74 = vst [vmem:[#allocation7] sm:$0xf] %v70
    %75 = vst [vmem:[#allocation7 + $0x4] sm:$0xf] %v71
    // Predicated region
    $region18: #{tpu_custom_call.1} parent=1 // pred_check
      _
    $region19: #{tpu_custom_call.1} parent=1 // pred_check_branch
      %77 = sbr.rel (0) target = $region21
    $region20: #{tpu_custom_call.1} parent=1 // pred_region
      %s79 = ssub.s32 128, 128
      %80 = vsyncadd [#allocation4], %s79
      %s81 = sshll.u32 [#allocation7], 4
      %s82 = int_to_ptr.vmem [resolvable:$true] %s81
      %87 = dma.vmem_to_hbm [thread:$0]  %s82, 128, %s2, [#allocation4], 64, 64, 4
    $region21: #{tpu_custom_call.1} parent=1 // pred_fallthru
      _
    // Predicated region
    $region22: #{tpu_custom_call.1} parent=1 // pred_check
      _
    $region23: #{tpu_custom_call.1} parent=1 // pred_check_branch
      %89 = sbr.rel (0) target = $region25
    $region24: #{tpu_custom_call.1} parent=1 // pred_region
      %90 = dma.done [#allocation4], 128
    $region25: #{tpu_custom_call.1} parent=1 // pred_fallthru
      _
    %91 = vsyncpa [#allocation3], 1
    %92 = vsyncpa [#allocation6], 1
    %93 = vsyncpa [#allocation4], 1

</llo_original>
